<compile_context>
chip_gen: v6e
topology: v6e:2x2x1
jax: 0.10.0
libtpu: 0.0.40
codegen_flags: <defaults>
</compile_context>

<pallas_src>
import functools

import jax
import jax.numpy as jnp
from jax.experimental import pallas as pl
from jax.experimental.pallas import tpu as pltpu


def _action_loss_kernel(*refs, pack: int):
    """Per-row (hoisted-normalization) BCE sums for one row tile.

    per_row_loss_sum = -( (1/sum_j l_ij) * sum_j l_ij*(log p_ij - log(1-p_ij))
                          + sum_j log(1-p_ij) )
    """
    if pack == 1:
        scores_ref, label_ref, out_ref = refs
        seg_ref = None
    else:
        scores_ref, label_ref, seg_ref, out_ref = refs

    # Upcast on the VPU inside the kernel (inputs may be bf16 in HBM).
    scores = scores_ref[...].astype(jnp.float32)
    label = label_ref[...].astype(jnp.float32)

    # PyTorch BCELoss clamps log at -100.
    log_p = jnp.maximum(jnp.log(scores), -100.0)
    log_1mp = jnp.maximum(jnp.log(1.0 - scores), -100.0)
    d = log_p - log_1mp

    if pack == 1:
        # Generic layout: one real row per sublane row; XLU row reductions.
        label_sum = jnp.sum(label, axis=1, keepdims=True)          # (T, 1)
        label_dot_d = jnp.sum(label * d, axis=1, keepdims=True)    # (T, 1)
        log_1mp_sum = jnp.sum(log_1mp, axis=1, keepdims=True)      # (T, 1)
    else:
        # Lane-packed layout: g real rows per kernel row. Segment sums go to
        # the otherwise-idle MXU via a constant (g*C, g) 0/1 matrix.
        seg = seg_ref[...]                                          # (g*C, g) f32

        def dotseg(x):
            return jnp.dot(x, seg, preferred_element_type=jnp.float32)

        def dotseg_split(x):
            # hi/lo split: full f32 accuracy even if the MXU rounds its f32
            # operands to bf16 passes (seg entries are 0/1, i.e. exact).
            x_hi = x.astype(jnp.bfloat16).astype(jnp.float32)
            return dotseg(x_hi) + dotseg(x - x_hi)

        label_sum = dotseg(label)                                   # exact: 0/1
        label_dot_d = dotseg_split(label * d)                       # (T, g)
        log_1mp_sum = dotseg_split(log_1mp)                         # (T, g)

    inv_sum = pl.reciprocal(label_sum, approx=False)
    out_ref[...] = -(inv_sum * label_dot_d + log_1mp_sum)


def _choose_packing(n_rows: int, n_cols: int) -> int:
    """g real rows per packed row, so the packed lane width g*C approaches 128."""
    if n_cols >= 128:
        return 1
    g_max = 128 // n_cols
    for g in range(g_max, 1, -1):
        if n_rows % g == 0:
            return g
    return 1


def _vmem_limit_bytes() -> int:
    """Chip-aware scoped-VMEM limit: ~48 MiB on v7x (64 MiB phys), ~96 MiB on v5e/v6e."""
    try:
        cap = int(pltpu.get_tpu_info().vmem_capacity_bytes)
    except Exception:
        cap = 64 * 1024 * 1024                      # conservative: v7x per-TC
    return min(96 * 1024 * 1024, max(32 * 1024 * 1024, cap * 3 // 4))


def _pick_tile_rows(n_rows: int, n_cols: int, itemsize: int,
                    working_set_bytes: int) -> int:
    """Largest row tile such that the per-step VMEM working set fits.

    Working set per step ~= 2 inputs x 2 pipeline buffers x T x C x itemsize
                            + ~6 full-tile f32 temporaries.
    """
    bytes_per_row = n_cols * (4 * itemsize + 6 * 4)
    rows = int(working_set_bytes // max(1, bytes_per_row))
    if rows >= n_rows:
        return n_rows                                # single full-extent block
    # TODO(synk): column-tiling path when even 8 rows x C exceed the budget.
    return max(8, (rows // 8) * 8)                   # (8, 128) sublane constraint


def action_loss(video_scores: jax.Array, label: jax.Array, *,
                tile_rows: int | None = None) -> jax.Array:
    """Pallas implementation of ActionLoss.forward. Returns a scalar f32 loss.

    bf16 inputs are encouraged (kernel upcasts internally); `tile_rows` is in
    packed-row units and is normally chosen automatically.
    """
    assert video_scores.shape == label.shape and video_scores.ndim == 2
    B, C = video_scores.shape

    # Lane packing for small class counts: (B, C) -> (B/g, g*C), row-major (free).
    g = _choose_packing(B, C)
    Bp, Cp = B // g, C * g
    scores_p = video_scores.reshape(Bp, Cp)
    label_p = label.reshape(Bp, Cp)

    itemsize = video_scores.dtype.itemsize
    vmem_limit = _vmem_limit_bytes()
    working_set = max(8 * 1024 * 1024, vmem_limit - 8 * 1024 * 1024)

    if tile_rows is None:
        tile_rows = _pick_tile_rows(Bp, Cp, itemsize, working_set)
    if tile_rows >= Bp:
        tile_rows = Bp                               # full-dim block is always legal
    else:
        tile_rows = max(8, (tile_rows // 8) * 8)
    num_tiles = pl.cdiv(Bp, tile_rows)

    in_specs = [
        pl.BlockSpec((tile_rows, Cp), lambda i: (i, 0)),
        pl.BlockSpec((tile_rows, Cp), lambda i: (i, 0)),
    ]
    args = [scores_p, label_p]
    if g > 1:
        # Constant 0/1 segment matrix: column j sums the j-th real row of each
        # packed super-row. Tiny, resident across the whole grid.
        seg = (jnp.arange(Cp, dtype=jnp.int32)[:, None] // C
               == jnp.arange(g, dtype=jnp.int32)[None, :]).astype(jnp.float32)
        in_specs.append(pl.BlockSpec((Cp, g), lambda i: (0, 0)))
        args.append(seg)

    # Per-row loss sums come out of the kernel; each grid step writes its own
    # output block, so the row-tile axis is "parallel" (v7x dual-TC split) and
    # the final reduction is a tiny tree-sum in the wrapper.
    per_row = pl.pallas_call(
        functools.partial(_action_loss_kernel, pack=g),
        out_shape=jax.ShapeDtypeStruct((Bp, g), jnp.float32),
        grid=(num_tiles,),
        in_specs=in_specs,
        out_specs=pl.BlockSpec((tile_rows, g), lambda i: (i, 0)),
        compiler_params=pltpu.CompilerParams(
            dimension_semantics=("parallel",),
            vmem_limit_bytes=vmem_limit,
        ),
    )(*args)

    return jnp.sum(per_row) * (1.0 / float(B * C))


def _reference(video_scores, label):
    video_scores = video_scores.astype(jnp.float32)
    label = label.astype(jnp.float32)
    label = label / jnp.sum(label, axis=1, keepdims=True)
    log_p = jnp.maximum(jnp.log(video_scores), -100.0)
    log_1mp = jnp.maximum(jnp.log(1.0 - video_scores), -100.0)
    return jnp.mean(-(label * log_p + (1.0 - label) * log_1mp))


if __name__ == "__main__":
    key = jax.random.PRNGKey(0)
    k1, k2, k3, k4, k5, k6 = jax.random.split(key, 6)

    def make(ks, kl, b, c, dtype):
        s = jax.nn.sigmoid(jax.random.normal(ks, (b, c), dtype=jnp.float32))
        l = (jax.random.uniform(kl, (b, c)) < 0.3).astype(jnp.float32)
        l = l.at[:, 0].set(1.0)                      # >=1 positive per row (no NaN)
        return s.astype(dtype), l.astype(dtype)

    # --- Test 1: spec-like small shape (batch=2, classes=16); packed path g=2.
    s1, l1 = make(k1, k2, 2, 16, jnp.float32)
    out1 = action_loss(s1, l1)
    jax.block_until_ready(out1)
    ref1 = _reference(s1, l1)
    assert jnp.allclose(out1, ref1, atol=2e-5, rtol=2e-5), (out1, ref1)

    # --- Test 2: unpacked path (C >= 128), multi-block parallel grid, ragged tail.
    s2, l2 = make(k3, k4, 20, 200, jnp.float32)
    out2 = action_loss(s2, l2, tile_rows=8)          # grid = 3, clipped last block
    jax.block_until_ready(out2)
    ref2 = _reference(s2, l2)
    assert jnp.allclose(out2, ref2, atol=2e-5, rtol=2e-5), (out2, ref2)

    # --- Test 3: bf16 inputs, packed path (g=8), multi-block + ragged tail.
    s3, l3 = make(k5, k6, 88, 16, jnp.bfloat16)
    out3 = action_loss(s3, l3, tile_rows=8)          # packed rows = 11, grid = 2
    jax.block_until_ready(out3)
    ref3 = _reference(s3, l3)
    assert jnp.allclose(out3, ref3, atol=5e-5, rtol=5e-5), (out3, ref3)

    print("KERNEL_OK")
</pallas_src>

<mosaic_0001>
module attributes {stable_mosaic.version = 11 : i64} {
  func.func @_action_loss_kernel(%arg0: i32, %arg1: memref<1x32xf32, #tpu.memory_space<vmem>>, %arg2: memref<1x32xf32, #tpu.memory_space<vmem>>, %arg3: memref<32x2xf32, #tpu.memory_space<vmem>>, %arg4: memref<1x2xf32, #tpu.memory_space<vmem>>) attributes {dimension_semantics = [#tpu.dimension_semantics<parallel>], iteration_bounds = array<i64: 1>, scalar_prefetch = 0 : i64, scratch_operands = 0 : i64, tpu.core_type = #tpu.core_type<tc>, window_params = [{transform_indices = @transform_0, window_bounds = array<i64: 1, 32>}, {transform_indices = @transform_1, window_bounds = array<i64: 1, 32>}, {pipeline_mode = #tpu.pipeline_mode<synchronous>, transform_indices = @transform_2, window_bounds = array<i64: 32, 2>}, {transform_indices = @transform_3, window_bounds = array<i64: 1, 2>}]} {
    %c0 = arith.constant 0 : index
    %c0_0 = arith.constant 0 : index
    %0 = vector.load %arg1[%c0, %c0_0] : memref<1x32xf32, #tpu.memory_space<vmem>>, vector<1x32xf32>
    %c0_1 = arith.constant 0 : index
    %c0_2 = arith.constant 0 : index
    %1 = vector.load %arg2[%c0_1, %c0_2] : memref<1x32xf32, #tpu.memory_space<vmem>>, vector<1x32xf32>
    %2 = math.log %0 : vector<1x32xf32>
    %cst = arith.constant -1.000000e+02 : f32
    %3 = vector.broadcast %cst : f32 to vector<1x32xf32>
    %4 = arith.maximumf %2, %3 : vector<1x32xf32>
    %cst_3 = arith.constant 1.000000e+00 : f32
    %5 = vector.broadcast %cst_3 : f32 to vector<1x32xf32>
    %6 = arith.subf %5, %0 : vector<1x32xf32>
    %7 = math.log %6 : vector<1x32xf32>
    %cst_4 = arith.constant -1.000000e+02 : f32
    %8 = vector.broadcast %cst_4 : f32 to vector<1x32xf32>
    %9 = arith.maximumf %7, %8 : vector<1x32xf32>
    %10 = arith.subf %4, %9 : vector<1x32xf32>
    %c0_5 = arith.constant 0 : index
    %c0_6 = arith.constant 0 : index
    %11 = vector.load %arg3[%c0_5, %c0_6] : memref<32x2xf32, #tpu.memory_space<vmem>>, vector<32x2xf32>
    %cst_7 = arith.constant dense<0.000000e+00> : vector<1x2xf32>
    %12 = tpu.matmul %1, %11, %cst_7 {dimension_numbers = #tpu.dot_dimension_numbers<[1], [0], [0], [1], [0, 0, 1, 1], [], []>} : vector<1x32xf32>, vector<32x2xf32>, vector<1x2xf32> -> vector<1x2xf32>
    %13 = arith.mulf %1, %10 : vector<1x32xf32>
    %14 = arith.truncf %13 : vector<1x32xf32> to vector<1x32xbf16>
    %15 = arith.extf %14 : vector<1x32xbf16> to vector<1x32xf32>
    %cst_8 = arith.constant dense<0.000000e+00> : vector<1x2xf32>
    %16 = tpu.matmul %15, %11, %cst_8 {dimension_numbers = #tpu.dot_dimension_numbers<[1], [0], [0], [1], [0, 0, 1, 1], [], []>} : vector<1x32xf32>, vector<32x2xf32>, vector<1x2xf32> -> vector<1x2xf32>
    %17 = arith.subf %13, %15 : vector<1x32xf32>
    %cst_9 = arith.constant dense<0.000000e+00> : vector<1x2xf32>
    %18 = tpu.matmul %17, %11, %cst_9 {dimension_numbers = #tpu.dot_dimension_numbers<[1], [0], [0], [1], [0, 0, 1, 1], [], []>} : vector<1x32xf32>, vector<32x2xf32>, vector<1x2xf32> -> vector<1x2xf32>
    %19 = arith.addf %16, %18 : vector<1x2xf32>
    %20 = arith.truncf %9 : vector<1x32xf32> to vector<1x32xbf16>
    %21 = arith.extf %20 : vector<1x32xbf16> to vector<1x32xf32>
    %cst_10 = arith.constant dense<0.000000e+00> : vector<1x2xf32>
    %22 = tpu.matmul %21, %11, %cst_10 {dimension_numbers = #tpu.dot_dimension_numbers<[1], [0], [0], [1], [0, 0, 1, 1], [], []>} : vector<1x32xf32>, vector<32x2xf32>, vector<1x2xf32> -> vector<1x2xf32>
    %23 = arith.subf %9, %21 : vector<1x32xf32>
    %cst_11 = arith.constant dense<0.000000e+00> : vector<1x2xf32>
    %24 = tpu.matmul %23, %11, %cst_11 {dimension_numbers = #tpu.dot_dimension_numbers<[1], [0], [0], [1], [0, 0, 1, 1], [], []>} : vector<1x32xf32>, vector<32x2xf32>, vector<1x2xf32> -> vector<1x2xf32>
    %25 = arith.addf %22, %24 : vector<1x2xf32>
    %26 = tpu.reciprocal %12 : vector<1x2xf32> -> vector<1x2xf32>
    %27 = arith.mulf %26, %19 : vector<1x2xf32>
    %28 = arith.addf %27, %25 : vector<1x2xf32>
    %cst_12 = arith.constant 0.000000e+00 : f32
    %29 = vector.broadcast %cst_12 : f32 to vector<1x2xf32>
    %30 = arith.subf %29, %28 : vector<1x2xf32>
    %c0_13 = arith.constant 0 : index
    %c0_14 = arith.constant 0 : index
    %31 = vector.load %arg4[%c0_13, %c0_14] : memref<1x2xf32, #tpu.memory_space<vmem>>, vector<1x2xf32>
    tpu.vector_store %arg4[%c0_13, %c0_14], %30 {strides = array<i32>} : memref<1x2xf32, #tpu.memory_space<vmem>>, vector<1x2xf32>,
    return
  }
  func.func @transform_0(%arg0: i32) -> (i32, i32) {
    %c0_i32 = arith.constant 0 : i32
    %c0_i32_0 = arith.constant 0 : i32
    return %arg0, %c0_i32 : i32, i32
  }
  func.func @transform_1(%arg0: i32) -> (i32, i32) {
    %c0_i32 = arith.constant 0 : i32
    %c0_i32_0 = arith.constant 0 : i32
    return %arg0, %c0_i32 : i32, i32
  }
  func.func @transform_2(%arg0: i32) -> (i32, i32) {
    %c0_i32 = arith.constant 0 : i32
    %c0_i32_0 = arith.constant 0 : i32
    %c0_i32_1 = arith.constant 0 : i32
    return %c0_i32, %c0_i32_0 : i32, i32
  }
  func.func @transform_3(%arg0: i32) -> (i32, i32) {
    %c0_i32 = arith.constant 0 : i32
    %c0_i32_0 = arith.constant 0 : i32
    return %arg0, %c0_i32 : i32, i32
  }
}

</mosaic_0001>

<llo_original>
// kernel: tpu_custom_call.1
$region0: #{tpu_custom_call.1}
  #allocation0 [shape = 'u32[]', space=smem, size = 0x4, offset = 0x4, fixed_abs, tag = 'smem constant byte address 0x4 - core index']
  #allocation1 [shape = 'u32[144,128]{1,0:T(1,128)}', space=vmem, size = 0x12000, scoped, tag = 'internal scratch']
  %s0 = inlined_call_operand.vmem [shape: f32[1,32], index: 0, kind: input, shape index: {}]
  %s1 = inlined_call_operand.vmem [shape: f32[1,32], index: 1, kind: input, shape index: {}]
  %s2 = inlined_call_operand.vmem [shape: f32[32,2], index: 2, kind: input, shape index: {}]
  %s3 = inlined_call_operand.hbm [shape: f32[1,2], index: 3, kind: output, shape index: {}]
  %s4 = sld [smem:[#allocation0]]
  $region22: #{tpu_custom_call.1} parent=0
    _
  %s6 = ssub.s32 1, %s4
  %s7 = scalar_select 0, %s6, %s4
  $region1: #{tpu_custom_call.1} parent=0
    #allocation2 [shape = 'u8[512]{0}', space=vmem, size = 0x400, scoped, tag = 'output window, operand 0, single buffered']
    #allocation3 [shape = 's32[1]{0}', space=sflag, size = 0x4, scoped, tag = 'scoped memory for tpu_custom_call.1']
    %8 = vsyncpa [#allocation3], 0
    // Predicated region
    $region2: #{tpu_custom_call.1} parent=1 // pred_check
      _
    $region3: #{tpu_custom_call.1} parent=1 // pred_check_branch
      %10 = sbr.rel (0) target = $region5
    $region4: #{tpu_custom_call.1} parent=1 // pred_region
      _
    $region5: #{tpu_custom_call.1} parent=1 // pred_fallthru
      _
    // Predicated region
    $region6: #{tpu_custom_call.1} parent=1 // pred_check
      _
    $region7: #{tpu_custom_call.1} parent=1 // pred_check_branch
      %12 = sbr.rel (0) target = $region9
    $region8: #{tpu_custom_call.1} parent=1 // pred_region
      _
    $region9: #{tpu_custom_call.1} parent=1 // pred_fallthru
      _
    // Predicated region
    $region10: #{tpu_custom_call.1} parent=1 // pred_check
      _
    $region11: #{tpu_custom_call.1} parent=1 // pred_check_branch
      %14 = sbr.rel (0) target = $region13
    $region12: #{tpu_custom_call.1} parent=1 // pred_region
      _
    $region13: #{tpu_custom_call.1} parent=1 // pred_fallthru
      _
    %v15 = vld [vmem:[%s0] sm:$0x1]
    %v16 = vld [vmem:[%s1] sm:$0x1]
    %v17 = vlog2.pop %v15
    %v18 = vmul.f32 %v17, 0.6931472
    %v19 = vmax.f32 %v18, -100.0
    %v20 = vsub.f32 1.0, %v15
    %v21 = vlog2.pop %v20
    %v22 = vmul.f32 %v21, 0.6931472
    %v23 = vmax.f32 %v22, -100.0
    %v24 = vsub.f32 %v19, %v23
    %v25 = vld [vmem:[%s2] sm:$0xff]
    %v26 = vld [vmem:[%s2 + $0x8] sm:$0xff]
    %v27 = vld [vmem:[%s2 + $0x10] sm:$0xff]
    %v28 = vld [vmem:[%s2 + $0x18] sm:$0xff]
    %vm29 = vcmask 261120
    %v31 = vsel %vm29, %v16, 0
    %33 = vmatprep.subr.mxu0 0.0
    %34 = vmatpush1.msra.mxu0 0.0
    %35 = vmatprep.subr.mxu0 0.0
    %36 = vmatpush1.msra.mxu0 0.0
    %37 = vmatprep.subr.mxu0 0.0
    %38 = vmatpush1.msra.mxu0 0.0
    %39 = vmatprep.subr.mxu0 0.0
    %40 = vmatpush1.msra.mxu0 0.0
    %41 = vmatprep.subr.mxu0 0.0
    %42 = vmatpush1.msra.mxu0 0.0
    %43 = vmatprep.subr.mxu0 0.0
    %44 = vmatpush1.msra.mxu0 0.0
    %45 = vmatprep.subr.mxu0 0.0
    %46 = vmatpush1.msra.mxu0 0.0
    %47 = vmatprep.subr.mxu0 0.0
    %48 = vmatpush1.msra.mxu0 0.0
    %49 = vmatprep.subr.mxu0 0.0
    %50 = vmatpush1.msra.mxu0 0.0
    %51 = vmatprep.subr.mxu0 0.0
    %52 = vmatpush1.msra.mxu0 0.0
    %53 = vmatprep.subr.mxu0 0.0
    %54 = vmatpush1.msra.mxu0 0.0
    %55 = vmatprep.subr.mxu0 0.0
    %56 = vmatpush1.msra.mxu0 0.0
    %57 = vmatprep.subr.mxu0 0.0
    %58 = vmatpush1.msra.mxu0 %v28
    %59 = vmatprep.subr.mxu0 0.0
    %60 = vmatpush1.msra.mxu0 %v27
    %61 = vmatprep.subr.mxu0 0.0
    %62 = vmatpush1.msra.mxu0 %v26
    %63 = vmatprep.subr.mxu0 0.0
    %64 = vmatpush1.msra.mxu0 %v25
    %65 = vmatprep.subr.mxu0 0.0
    %66 = vmatpush2.msra.mxu0 0.0
    %67 = vmatprep.subr.mxu0 0.0
    %68 = vmatpush2.msra.mxu0 0.0
    %69 = vmatprep.subr.mxu0 0.0
    %70 = vmatpush2.msra.mxu0 0.0
    %71 = vmatprep.subr.mxu0 0.0
    %72 = vmatpush2.msra.mxu0 0.0
    %73 = vmatprep.subr.mxu0 0.0
    %74 = vmatpush2.msra.mxu0 0.0
    %75 = vmatprep.subr.mxu0 0.0
    %76 = vmatpush2.msra.mxu0 0.0
    %77 = vmatprep.subr.mxu0 0.0
    %78 = vmatpush2.msra.mxu0 0.0
    %79 = vmatprep.subr.mxu0 0.0
    %80 = vmatpush2.msra.mxu0 0.0
    %81 = vmatprep.subr.mxu0 0.0
    %82 = vmatpush2.msra.mxu0 0.0
    %83 = vmatprep.subr.mxu0 0.0
    %84 = vmatpush2.msra.mxu0 0.0
    %85 = vmatprep.subr.mxu0 0.0
    %86 = vmatpush2.msra.mxu0 0.0
    %87 = vmatprep.subr.mxu0 0.0
    %88 = vmatpush2.msra.mxu0 0.0
    %89 = vmatprep.subr.mxu0 0.0
    %90 = vmatpush2.msra.mxu0 0.0
    %91 = vmatprep.subr.mxu0 0.0
    %92 = vmatpush2.msra.mxu0 0.0
    %93 = vmatprep.subr.mxu0 0.0
    %94 = vmatpush2.msra.mxu0 0.0
    %95 = vmatprep.subr.mxu0 0.0
    %96 = vmatpush2.msra.mxu0 0.0
    %97 = vmatprep.mubr.f32.mxu0 0.0
    %98 = vmatmul.mubr.f32.gmra.mxu0 %v31
    %v99 = vpop.f32.mrf.mxu0
    %v100 = vadd.f32 0.0, %v99
    %v101 = vpop.f32.mrf.mxu0
    %102 = vdwg.mxu0
    %v103 = vmul.f32 %v16, %v24
    %v104 = vpack.c.bf16 %v103, %v103
    %v105 = vunpack.c.l.bf16 %v104
    %v106 = vsub.f32 %v103, %v105
    %v108 = vsel %vm29, %v106, 0
    %110 = vmatprep.subr.mxu0 0.0
    %111 = vmatpush1.msra.mxu0 0.0
    %112 = vmatprep.subr.mxu0 0.0
    %113 = vmatpush1.msra.mxu0 0.0
    %114 = vmatprep.subr.mxu0 0.0
    %115 = vmatpush1.msra.mxu0 0.0
    %116 = vmatprep.subr.mxu0 0.0
    %117 = vmatpush1.msra.mxu0 0.0
    %118 = vmatprep.subr.mxu0 0.0
    %119 = vmatpush1.msra.mxu0 0.0
    %120 = vmatprep.subr.mxu0 0.0
    %121 = vmatpush1.msra.mxu0 0.0
    %122 = vmatprep.subr.mxu0 0.0
    %123 = vmatpush1.msra.mxu0 0.0
    %124 = vmatprep.subr.mxu0 0.0
    %125 = vmatpush1.msra.mxu0 0.0
    %126 = vmatprep.subr.mxu0 0.0
    %127 = vmatpush1.msra.mxu0 0.0
    %128 = vmatprep.subr.mxu0 0.0
    %129 = vmatpush1.msra.mxu0 0.0
    %130 = vmatprep.subr.mxu0 0.0
    %131 = vmatpush1.msra.mxu0 0.0
    %132 = vmatprep.subr.mxu0 0.0
    %133 = vmatpush1.msra.mxu0 0.0
    %134 = vmatprep.subr.mxu0 0.0
    %135 = vmatpush1.msra.mxu0 %v28
    %136 = vmatprep.subr.mxu0 0.0
    %137 = vmatpush1.msra.mxu0 %v27
    %138 = vmatprep.subr.mxu0 0.0
    %139 = vmatpush1.msra.mxu0 %v26
    %140 = vmatprep.subr.mxu0 0.0
    %141 = vmatpush1.msra.mxu0 %v25
    %142 = vmatprep.subr.mxu0 0.0
    %143 = vmatpush2.msra.mxu0 0.0
    %144 = vmatprep.subr.mxu0 0.0
    %145 = vmatpush2.msra.mxu0 0.0
    %146 = vmatprep.subr.mxu0 0.0
    %147 = vmatpush2.msra.mxu0 0.0
    %148 = vmatprep.subr.mxu0 0.0
    %149 = vmatpush2.msra.mxu0 0.0
    %150 = vmatprep.subr.mxu0 0.0
    %151 = vmatpush2.msra.mxu0 0.0
    %152 = vmatprep.subr.mxu0 0.0
    %153 = vmatpush2.msra.mxu0 0.0
    %154 = vmatprep.subr.mxu0 0.0
    %155 = vmatpush2.msra.mxu0 0.0
    %156 = vmatprep.subr.mxu0 0.0
    %157 = vmatpush2.msra.mxu0 0.0
    %158 = vmatprep.subr.mxu0 0.0
    %159 = vmatpush2.msra.mxu0 0.0
    %160 = vmatprep.subr.mxu0 0.0
    %161 = vmatpush2.msra.mxu0 0.0
    %162 = vmatprep.subr.mxu0 0.0
    %163 = vmatpush2.msra.mxu0 0.0
    %164 = vmatprep.subr.mxu0 0.0
    %165 = vmatpush2.msra.mxu0 0.0
    %166 = vmatprep.subr.mxu0 0.0
    %167 = vmatpush2.msra.mxu0 0.0
    %168 = vmatprep.subr.mxu0 0.0
    %169 = vmatpush2.msra.mxu0 0.0
    %170 = vmatprep.subr.mxu0 0.0
    %171 = vmatpush2.msra.mxu0 0.0
    %172 = vmatprep.subr.mxu0 0.0
    %173 = vmatpush2.msra.mxu0 0.0
    %174 = vmatprep.mubr.f32.mxu0 0.0
    %175 = vmatmul.mubr.f32.gmra.mxu0 %v108
    %v176 = vpop.f32.mrf.mxu0
    %v177 = vadd.f32 0.0, %v176
    %v178 = vpop.f32.mrf.mxu0
    %179 = vdwg.mxu0
    %v181 = vsel %vm29, %v105, 0
    %183 = vmatprep.subr.mxu0 0.0
    %184 = vmatpush1.msra.mxu0 0.0
    %185 = vmatprep.subr.mxu0 0.0
    %186 = vmatpush1.msra.mxu0 0.0
    %187 = vmatprep.subr.mxu0 0.0
    %188 = vmatpush1.msra.mxu0 0.0
    %189 = vmatprep.subr.mxu0 0.0
    %190 = vmatpush1.msra.mxu0 0.0
    %191 = vmatprep.subr.mxu0 0.0
    %192 = vmatpush1.msra.mxu0 0.0
    %193 = vmatprep.subr.mxu0 0.0
    %194 = vmatpush1.msra.mxu0 0.0
    %195 = vmatprep.subr.mxu0 0.0
    %196 = vmatpush1.msra.mxu0 0.0
    %197 = vmatprep.subr.mxu0 0.0
    %198 = vmatpush1.msra.mxu0 0.0
    %199 = vmatprep.subr.mxu0 0.0
    %200 = vmatpush1.msra.mxu0 0.0
    %201 = vmatprep.subr.mxu0 0.0
    %202 = vmatpush1.msra.mxu0 0.0
    %203 = vmatprep.subr.mxu0 0.0
    %204 = vmatpush1.msra.mxu0 0.0
    %205 = vmatprep.subr.mxu0 0.0
    %206 = vmatpush1.msra.mxu0 0.0
    %207 = vmatprep.subr.mxu0 0.0
    %208 = vmatpush1.msra.mxu0 %v28
    %209 = vmatprep.subr.mxu0 0.0
    %210 = vmatpush1.msra.mxu0 %v27
    %211 = vmatprep.subr.mxu0 0.0
    %212 = vmatpush1.msra.mxu0 %v26
    %213 = vmatprep.subr.mxu0 0.0
    %214 = vmatpush1.msra.mxu0 %v25
    %215 = vmatprep.subr.mxu0 0.0
    %216 = vmatpush2.msra.mxu0 0.0
    %217 = vmatprep.subr.mxu0 0.0
    %218 = vmatpush2.msra.mxu0 0.0
    %219 = vmatprep.subr.mxu0 0.0
    %220 = vmatpush2.msra.mxu0 0.0
    %221 = vmatprep.subr.mxu0 0.0
    %222 = vmatpush2.msra.mxu0 0.0
    %223 = vmatprep.subr.mxu0 0.0
    %224 = vmatpush2.msra.mxu0 0.0
    %225 = vmatprep.subr.mxu0 0.0
    %226 = vmatpush2.msra.mxu0 0.0
    %227 = vmatprep.subr.mxu0 0.0
    %228 = vmatpush2.msra.mxu0 0.0
    %229 = vmatprep.subr.mxu0 0.0
    %230 = vmatpush2.msra.mxu0 0.0
    %231 = vmatprep.subr.mxu0 0.0
    %232 = vmatpush2.msra.mxu0 0.0
    %233 = vmatprep.subr.mxu0 0.0
    %234 = vmatpush2.msra.mxu0 0.0
    %235 = vmatprep.subr.mxu0 0.0
    %236 = vmatpush2.msra.mxu0 0.0
    %237 = vmatprep.subr.mxu0 0.0
    %238 = vmatpush2.msra.mxu0 0.0
    %239 = vmatprep.subr.mxu0 0.0
    %240 = vmatpush2.msra.mxu0 0.0
    %241 = vmatprep.subr.mxu0 0.0
    %242 = vmatpush2.msra.mxu0 0.0
    %243 = vmatprep.subr.mxu0 0.0
    %244 = vmatpush2.msra.mxu0 0.0
    %245 = vmatprep.subr.mxu0 0.0
    %246 = vmatpush2.msra.mxu0 0.0
    %247 = vmatprep.mubr.f32.mxu0 0.0
    %248 = vmatmul.mubr.f32.gmra.mxu0 %v181
    %v249 = vpop.f32.mrf.mxu0
    %v250 = vadd.f32 %v177, %v249
    %v251 = vpop.f32.mrf.mxu0
    %252 = vdwg.mxu0
    %v253 = vpack.c.bf16 %v23, %v23
    %v254 = vunpack.c.l.bf16 %v253
    %v255 = vsub.f32 %v23, %v254
    %v257 = vsel %vm29, %v255, 0
    %259 = vmatprep.subr.mxu0 0.0
    %260 = vmatpush1.msra.mxu0 0.0
    %261 = vmatprep.subr.mxu0 0.0
    %262 = vmatpush1.msra.mxu0 0.0
    %263 = vmatprep.subr.mxu0 0.0
    %264 = vmatpush1.msra.mxu0 0.0
    %265 = vmatprep.subr.mxu0 0.0
    %266 = vmatpush1.msra.mxu0 0.0
    %267 = vmatprep.subr.mxu0 0.0
    %268 = vmatpush1.msra.mxu0 0.0
    %269 = vmatprep.subr.mxu0 0.0
    %270 = vmatpush1.msra.mxu0 0.0
    %271 = vmatprep.subr.mxu0 0.0
    %272 = vmatpush1.msra.mxu0 0.0
    %273 = vmatprep.subr.mxu0 0.0
    %274 = vmatpush1.msra.mxu0 0.0
    %275 = vmatprep.subr.mxu0 0.0
    %276 = vmatpush1.msra.mxu0 0.0
    %277 = vmatprep.subr.mxu0 0.0
    %278 = vmatpush1.msra.mxu0 0.0
    %279 = vmatprep.subr.mxu0 0.0
    %280 = vmatpush1.msra.mxu0 0.0
    %281 = vmatprep.subr.mxu0 0.0
    %282 = vmatpush1.msra.mxu0 0.0
    %283 = vmatprep.subr.mxu0 0.0
    %284 = vmatpush1.msra.mxu0 %v28
    %285 = vmatprep.subr.mxu0 0.0
    %286 = vmatpush1.msra.mxu0 %v27
    %287 = vmatprep.subr.mxu0 0.0
    %288 = vmatpush1.msra.mxu0 %v26
    %289 = vmatprep.subr.mxu0 0.0
    %290 = vmatpush1.msra.mxu0 %v25
    %291 = vmatprep.subr.mxu0 0.0
    %292 = vmatpush2.msra.mxu0 0.0
    %293 = vmatprep.subr.mxu0 0.0
    %294 = vmatpush2.msra.mxu0 0.0
    %295 = vmatprep.subr.mxu0 0.0
    %296 = vmatpush2.msra.mxu0 0.0
    %297 = vmatprep.subr.mxu0 0.0
    %298 = vmatpush2.msra.mxu0 0.0
    %299 = vmatprep.subr.mxu0 0.0
    %300 = vmatpush2.msra.mxu0 0.0
    %301 = vmatprep.subr.mxu0 0.0
    %302 = vmatpush2.msra.mxu0 0.0
    %303 = vmatprep.subr.mxu0 0.0
    %304 = vmatpush2.msra.mxu0 0.0
    %305 = vmatprep.subr.mxu0 0.0
    %306 = vmatpush2.msra.mxu0 0.0
    %307 = vmatprep.subr.mxu0 0.0
    %308 = vmatpush2.msra.mxu0 0.0
    %309 = vmatprep.subr.mxu0 0.0
    %310 = vmatpush2.msra.mxu0 0.0
    %311 = vmatprep.subr.mxu0 0.0
    %312 = vmatpush2.msra.mxu0 0.0
    %313 = vmatprep.subr.mxu0 0.0
    %314 = vmatpush2.msra.mxu0 0.0
    %315 = vmatprep.subr.mxu0 0.0
    %316 = vmatpush2.msra.mxu0 0.0
    %317 = vmatprep.subr.mxu0 0.0
    %318 = vmatpush2.msra.mxu0 0.0
    %319 = vmatprep.subr.mxu0 0.0
    %320 = vmatpush2.msra.mxu0 0.0
    %321 = vmatprep.subr.mxu0 0.0
    %322 = vmatpush2.msra.mxu0 0.0
    %323 = vmatprep.mubr.f32.mxu0 0.0
    %324 = vmatmul.mubr.f32.gmra.mxu0 %v257
    %v325 = vpop.f32.mrf.mxu0
    %v326 = vadd.f32 0.0, %v325
    %v327 = vpop.f32.mrf.mxu0
    %328 = vdwg.mxu0
    %v330 = vsel %vm29, %v254, 0
    %332 = vmatprep.subr.mxu0 0.0
    %333 = vmatpush1.msra.mxu0 0.0
    %334 = vmatprep.subr.mxu0 0.0
    %335 = vmatpush1.msra.mxu0 0.0
    %336 = vmatprep.subr.mxu0 0.0
    %337 = vmatpush1.msra.mxu0 0.0
    %338 = vmatprep.subr.mxu0 0.0
    %339 = vmatpush1.msra.mxu0 0.0
    %340 = vmatprep.subr.mxu0 0.0
    %341 = vmatpush1.msra.mxu0 0.0
    %342 = vmatprep.subr.mxu0 0.0
    %343 = vmatpush1.msra.mxu0 0.0
    %344 = vmatprep.subr.mxu0 0.0
    %345 = vmatpush1.msra.mxu0 0.0
    %346 = vmatprep.subr.mxu0 0.0
    %347 = vmatpush1.msra.mxu0 0.0
    %348 = vmatprep.subr.mxu0 0.0
    %349 = vmatpush1.msra.mxu0 0.0
    %350 = vmatprep.subr.mxu0 0.0
    %351 = vmatpush1.msra.mxu0 0.0
    %352 = vmatprep.subr.mxu0 0.0
    %353 = vmatpush1.msra.mxu0 0.0
    %354 = vmatprep.subr.mxu0 0.0
    %355 = vmatpush1.msra.mxu0 0.0
    %356 = vmatprep.subr.mxu0 0.0
    %357 = vmatpush1.msra.mxu0 %v28
    %358 = vmatprep.subr.mxu0 0.0
    %359 = vmatpush1.msra.mxu0 %v27
    %360 = vmatprep.subr.mxu0 0.0
    %361 = vmatpush1.msra.mxu0 %v26
    %362 = vmatprep.subr.mxu0 0.0
    %363 = vmatpush1.msra.mxu0 %v25
    %364 = vmatprep.subr.mxu0 0.0
    %365 = vmatpush2.msra.mxu0 0.0
    %366 = vmatprep.subr.mxu0 0.0
    %367 = vmatpush2.msra.mxu0 0.0
    %368 = vmatprep.subr.mxu0 0.0
    %369 = vmatpush2.msra.mxu0 0.0
    %370 = vmatprep.subr.mxu0 0.0
    %371 = vmatpush2.msra.mxu0 0.0
    %372 = vmatprep.subr.mxu0 0.0
    %373 = vmatpush2.msra.mxu0 0.0
    %374 = vmatprep.subr.mxu0 0.0
    %375 = vmatpush2.msra.mxu0 0.0
    %376 = vmatprep.subr.mxu0 0.0
    %377 = vmatpush2.msra.mxu0 0.0
    %378 = vmatprep.subr.mxu0 0.0
    %379 = vmatpush2.msra.mxu0 0.0
    %380 = vmatprep.subr.mxu0 0.0
    %381 = vmatpush2.msra.mxu0 0.0
    %382 = vmatprep.subr.mxu0 0.0
    %383 = vmatpush2.msra.mxu0 0.0
    %384 = vmatprep.subr.mxu0 0.0
    %385 = vmatpush2.msra.mxu0 0.0
    %386 = vmatprep.subr.mxu0 0.0
    %387 = vmatpush2.msra.mxu0 0.0
    %388 = vmatprep.subr.mxu0 0.0
    %389 = vmatpush2.msra.mxu0 0.0
    %390 = vmatprep.subr.mxu0 0.0
    %391 = vmatpush2.msra.mxu0 0.0
    %392 = vmatprep.subr.mxu0 0.0
    %393 = vmatpush2.msra.mxu0 0.0
    %394 = vmatprep.subr.mxu0 0.0
    %395 = vmatpush2.msra.mxu0 0.0
    %396 = vmatprep.mubr.f32.mxu0 0.0
    %397 = vmatmul.mubr.f32.gmra.mxu0 %v330
    %v398 = vpop.f32.mrf.mxu0
    %v399 = vadd.f32 %v326, %v398
    %v400 = vpop.f32.mrf.mxu0
    %401 = vdwg.mxu0
    %v402 = vrcp.pop %v100
    %v403 = vmul.f32 %v402, %v250
    %v404 = vadd.f32 %v403, %v399
    %v405 = vsub.f32 0.0, %v404
    %vm406 = vcmask 8192
    %407 = vst.msk [vmem:[#allocation2] sm:$0x1] %vm406, %v405
    // Predicated region
    $region14: #{tpu_custom_call.1} parent=1 // pred_check
      _
    $region15: #{tpu_custom_call.1} parent=1 // pred_check_branch
      %409 = sbr.rel (0) target = $region17
    $region16: #{tpu_custom_call.1} parent=1 // pred_region
      %s411 = ssub.s32 16, 16
      %412 = vsyncadd [#allocation3], %s411
      %s414 = sshll.u32 [#allocation2], 4
      %s415 = int_to_ptr.vmem [resolvable:$true] %s414
      %417 = dma.vmem_to_hbm [thread:$0]  %s415, 16, %s3, [#allocation3]
    $region17: #{tpu_custom_call.1} parent=1 // pred_fallthru
      _
    // Predicated region
    $region18: #{tpu_custom_call.1} parent=1 // pred_check
      _
    $region19: #{tpu_custom_call.1} parent=1 // pred_check_branch
      %419 = sbr.rel (0) target = $region21
    $region20: #{tpu_custom_call.1} parent=1 // pred_region
      %420 = dma.done [#allocation3], 16
    $region21: #{tpu_custom_call.1} parent=1 // pred_fallthru
      _
    %421 = vsyncpa [#allocation3], 1

</llo_original>
